<compile_context>
chip_gen: v6e
topology: v6e:2x2x1
jax: 0.10.0
libtpu: 0.0.40
codegen_flags: <defaults>
</compile_context>

<pallas_src>
import functools

import jax
import jax.numpy as jnp
from jax import lax
from jax.experimental import pallas as pl
from jax.experimental.pallas import tpu as pltpu


def _glru_kernel(*refs, eps, use_tied_gates, ts):
    if use_tied_gates:
        (xi_ref, xig_ref, xog_ref, o_ref,
         p_buf, r_buf, prod_c, acc_c) = refs
        xfg_ref = None
    else:
        (xi_ref, xig_ref, xfg_ref, xog_ref, o_ref,
         p_buf, r_buf, prod_c, acc_c) = refs

    si = pl.program_id(2)

    # Re-init the running (cumprod, cumsum) carries at the start of every
    # (batch-tile, d_h-tile) sequence sweep.
    @pl.when(si == 0)
    def _():
        prod_c[...] = jnp.ones_like(prod_c)
        acc_c[...] = jnp.zeros_like(acc_c)

    # ---- Bulk phase 1: activations, vectorized over the whole tile. ----
    ig = jax.nn.sigmoid(xig_ref[...].astype(jnp.float32))
    if use_tied_gates:
        p_buf[...] = 1.0 - ig                                       # forget gate
    else:
        p_buf[...] = jax.nn.sigmoid(xfg_ref[...].astype(jnp.float32))
    r_buf[...] = jnp.tanh(xi_ref[...].astype(jnp.float32)) * ig     # kv

    # ---- Serial phase 1: running product over time (one mul per step). ----
    def prod_body(t, pv):
        pv = pv * p_buf[pl.ds(t, 1)]        # (1, TB, TD)
        p_buf[pl.ds(t, 1)] = pv
        return pv

    prod_c[...] = lax.fori_loop(0, ts, prod_body, prod_c[...], unroll=8)

    # ---- Bulk phase 2: kv / (cumprod + eps) over the whole tile. ----
    r_buf[...] = r_buf[...] / (p_buf[...] + eps)

    # ---- Serial phase 2: running sum over time (one add per step). ----
    def sum_body(t, cv):
        cv = cv + r_buf[pl.ds(t, 1)]        # (1, TB, TD)
        r_buf[pl.ds(t, 1)] = cv
        return cv

    acc_c[...] = lax.fori_loop(0, ts, sum_body, acc_c[...], unroll=8)

    # ---- Bulk epilogue: y = tanh(P * C) * output_gate, full-width store. ----
    og = jax.nn.sigmoid(xog_ref[...].astype(jnp.float32))
    o_ref[...] = (jnp.tanh(p_buf[...] * r_buf[...]) * og).astype(o_ref.dtype)


def _pick_tile(dim, candidates):
    for c in candidates:
        if dim % c == 0:
            return c
    return dim


def recurrent_scan_glru(x, d_h, *, use_tied_gates=True, eps=1e-4):
    b, seq_len, feat = x.shape
    n = 3 if use_tied_gates else 4
    assert feat == n * d_h, f"expected last dim {n * d_h}, got {feat}"

    # Tile sizes: TB fills the 8 sublanes when batch allows; TD keeps the lane
    # axis dense (multiple of 128) when d_h allows; TS bounds VMEM per block.
    tb = 8 if b >= 8 else b
    b_pad = ((b + tb - 1) // tb) * tb
    td = _pick_tile(d_h, (256, 128))
    ts = _pick_tile(seq_len, (128, 64, 32, 16, 8))
    # TODO(synk): a seq_len with no small divisor falls back to full-sequence
    # blocks (ts == seq_len), which may exceed VMEM for very long sequences.

    # Wrapper-side layout plumbing: time-major (S, B, d_h) gate slabs so each
    # per-timestep slice maps batch -> sublanes and channels -> lanes.
    xt = jnp.transpose(x, (1, 0, 2))                       # (S, b, n*d_h)
    if b_pad != b:
        xt = jnp.pad(xt, ((0, 0), (0, b_pad - b), (0, 0)))
    slabs = [xt[:, :, g * d_h:(g + 1) * d_h] for g in range(n)]

    kernel = functools.partial(
        _glru_kernel, eps=eps, use_tied_gates=use_tied_gates, ts=ts)

    def imap(bi, di, si):
        return (si, bi, di)

    grid = (b_pad // tb, d_h // td, seq_len // ts)

    out_t = pl.pallas_call(
        kernel,
        out_shape=jax.ShapeDtypeStruct((seq_len, b_pad, d_h), x.dtype),
        grid_spec=pltpu.PrefetchScalarGridSpec(
            num_scalar_prefetch=0,
            grid=grid,
            in_specs=[pl.BlockSpec((ts, tb, td), imap)] * n,
            out_specs=pl.BlockSpec((ts, tb, td), imap),
            scratch_shapes=[
                pltpu.VMEM((ts, tb, td), jnp.float32),   # forget-gate / cumprod
                pltpu.VMEM((ts, tb, td), jnp.float32),   # kv / cumsum
                pltpu.VMEM((1, tb, td), jnp.float32),    # running-product carry
                pltpu.VMEM((1, tb, td), jnp.float32),    # running-sum carry
            ],
        ),
        compiler_params=pltpu.CompilerParams(
            dimension_semantics=("parallel", "parallel", "arbitrary")),
    )(*slabs)

    y = jnp.transpose(out_t, (1, 0, 2))                    # (b_pad, S, d_h)
    return y[:b] if b_pad != b else y


def _reference(x, d_h, *, use_tied_gates=True, eps=1e-4):
    input_t = jnp.tanh(x[:, :, :d_h])
    gates_t = jax.nn.sigmoid(x[:, :, d_h:])
    if use_tied_gates:
        input_gate, output_gate = jnp.split(gates_t, 2, axis=-1)
        forget_gate = 1.0 - input_gate
    else:
        input_gate, forget_gate, output_gate = jnp.split(gates_t, 3, axis=-1)
    kv = input_t * input_gate
    cum_prod_a = jnp.cumprod(forget_gate, axis=1)
    y = cum_prod_a * jnp.cumsum(kv / (cum_prod_a + eps), axis=1)
    return jnp.tanh(y) * output_gate


if __name__ == "__main__":
    base_key = jax.random.PRNGKey(0)
    keys = jax.random.split(base_key, 3)

    def _check(key, batch, seq_len, d_h, use_tied_gates, tol):
        n = 3 if use_tied_gates else 4
        x = jax.random.normal(key, (batch, seq_len, n * d_h), dtype=jnp.float32)
        y = jax.block_until_ready(
            recurrent_scan_glru(x, d_h, use_tied_gates=use_tied_gates, eps=1e-4))
        y_ref = _reference(x, d_h, use_tied_gates=use_tied_gates, eps=1e-4)
        assert y.shape == (batch, seq_len, d_h)
        err = jnp.max(jnp.abs(y - y_ref))
        assert jnp.allclose(y, y_ref, atol=tol, rtol=tol), f"mismatch: {err}"

    # Small shape consistent with the module's forward contract (tied gates).
    _check(keys[0], batch=2, seq_len=8, d_h=32, use_tied_gates=True, tol=1e-5)
    # Untied-gate variant.
    _check(keys[1], batch=2, seq_len=8, d_h=32, use_tied_gates=False, tol=1e-5)
    # Larger shape exercising seq-tile carries, d_h tiling and batch sublanes.
    _check(keys[2], batch=4, seq_len=256, d_h=512, use_tied_gates=True, tol=1e-3)

    print("KERNEL_OK")
</pallas_src>

<mosaic_0001>
module attributes {stable_mosaic.version = 11 : i64} {
  func.func @_glru_kernel(%arg0: i32, %arg1: i32, %arg2: i32, %arg3: memref<8x2x32xf32, #tpu.memory_space<vmem>>, %arg4: memref<8x2x32xf32, #tpu.memory_space<vmem>>, %arg5: memref<8x2x32xf32, #tpu.memory_space<vmem>>, %arg6: memref<8x2x32xf32, #tpu.memory_space<vmem>>, %arg7: memref<8x2x32xf32, #tpu.memory_space<vmem>>, %arg8: memref<8x2x32xf32, #tpu.memory_space<vmem>>, %arg9: memref<1x2x32xf32, #tpu.memory_space<vmem>>, %arg10: memref<1x2x32xf32, #tpu.memory_space<vmem>>) attributes {dimension_semantics = [#tpu.dimension_semantics<parallel>, #tpu.dimension_semantics<parallel>, #tpu.dimension_semantics<arbitrary>], iteration_bounds = array<i64: 1, 1, 1>, scalar_prefetch = 0 : i64, scratch_operands = 4 : i64, tpu.core_type = #tpu.core_type<tc>, window_params = [{transform_indices = @transform_0, window_bounds = array<i64: 8, 2, 32>}, {transform_indices = @transform_1, window_bounds = array<i64: 8, 2, 32>}, {transform_indices = @transform_2, window_bounds = array<i64: 8, 2, 32>}, {transform_indices = @transform_3, window_bounds = array<i64: 8, 2, 32>}]} {
    %c0_i32 = arith.constant 0 : i32
    %0 = arith.cmpi eq, %arg2, %c0_i32 : i32
    %1 = arith.extui %0 : i1 to i32
    %c0_i32_0 = arith.constant 0 : i32
    %2 = arith.cmpi ne, %1, %c0_i32_0 : i32
    scf.if %2 {
      %cst_122 = arith.constant 1.000000e+00 : f32
      %118 = vector.broadcast %cst_122 : f32 to vector<1x2x32xf32>
      %c0_123 = arith.constant 0 : index
      %c0_124 = arith.constant 0 : index
      %c0_125 = arith.constant 0 : index
      %119 = vector.load %arg9[%c0_123, %c0_124, %c0_125] : memref<1x2x32xf32, #tpu.memory_space<vmem>>, vector<1x2x32xf32>
      tpu.vector_store %arg9[%c0_123, %c0_124, %c0_125], %118 {strides = array<i32>} : memref<1x2x32xf32, #tpu.memory_space<vmem>>, vector<1x2x32xf32>,
      %cst_126 = arith.constant 0.000000e+00 : f32
      %120 = vector.broadcast %cst_126 : f32 to vector<1x2x32xf32>
      %c0_127 = arith.constant 0 : index
      %c0_128 = arith.constant 0 : index
      %c0_129 = arith.constant 0 : index
      %121 = vector.load %arg10[%c0_127, %c0_128, %c0_129] : memref<1x2x32xf32, #tpu.memory_space<vmem>>, vector<1x2x32xf32>
      tpu.vector_store %arg10[%c0_127, %c0_128, %c0_129], %120 {strides = array<i32>} : memref<1x2x32xf32, #tpu.memory_space<vmem>>, vector<1x2x32xf32>,
    } else {
    }
    %c0 = arith.constant 0 : index
    %c0_1 = arith.constant 0 : index
    %c0_2 = arith.constant 0 : index
    %3 = vector.load %arg4[%c0, %c0_1, %c0_2] : memref<8x2x32xf32, #tpu.memory_space<vmem>>, vector<8x2x32xf32>
    %4 = arith.negf %3 : vector<8x2x32xf32>
    %5 = math.exp %4 : vector<8x2x32xf32>
    %cst = arith.constant 1.000000e+00 : f32
    %6 = vector.broadcast %cst : f32 to vector<8x2x32xf32>
    %7 = arith.addf %6, %5 : vector<8x2x32xf32>
    %8 = arith.divf %6, %7 : vector<8x2x32xf32>
    %cst_3 = arith.constant 1.000000e+00 : f32
    %9 = vector.broadcast %cst_3 : f32 to vector<8x2x32xf32>
    %10 = arith.subf %9, %8 : vector<8x2x32xf32>
    %c0_4 = arith.constant 0 : index
    %c0_5 = arith.constant 0 : index
    %c0_6 = arith.constant 0 : index
    %11 = vector.load %arg7[%c0_4, %c0_5, %c0_6] : memref<8x2x32xf32, #tpu.memory_space<vmem>>, vector<8x2x32xf32>
    tpu.vector_store %arg7[%c0_4, %c0_5, %c0_6], %10 {strides = array<i32>} : memref<8x2x32xf32, #tpu.memory_space<vmem>>, vector<8x2x32xf32>,
    %c0_7 = arith.constant 0 : index
    %c0_8 = arith.constant 0 : index
    %c0_9 = arith.constant 0 : index
    %12 = vector.load %arg3[%c0_7, %c0_8, %c0_9] : memref<8x2x32xf32, #tpu.memory_space<vmem>>, vector<8x2x32xf32>
    %13 = math.tanh %12 : vector<8x2x32xf32>
    %14 = arith.mulf %13, %8 : vector<8x2x32xf32>
    %c0_10 = arith.constant 0 : index
    %c0_11 = arith.constant 0 : index
    %c0_12 = arith.constant 0 : index
    %15 = vector.load %arg8[%c0_10, %c0_11, %c0_12] : memref<8x2x32xf32, #tpu.memory_space<vmem>>, vector<8x2x32xf32>
    tpu.vector_store %arg8[%c0_10, %c0_11, %c0_12], %14 {strides = array<i32>} : memref<8x2x32xf32, #tpu.memory_space<vmem>>, vector<8x2x32xf32>,
    %c0_13 = arith.constant 0 : index
    %c0_14 = arith.constant 0 : index
    %c0_15 = arith.constant 0 : index
    %16 = vector.load %arg9[%c0_13, %c0_14, %c0_15] : memref<1x2x32xf32, #tpu.memory_space<vmem>>, vector<1x2x32xf32>
    %c0_i32_16 = arith.constant 0 : i32
    %17 = arith.index_cast %c0_i32_16 : i32 to index
    %c0_17 = arith.constant 0 : index
    %c0_18 = arith.constant 0 : index
    %18 = vector.load %arg7[%17, %c0_17, %c0_18] : memref<8x2x32xf32, #tpu.memory_space<vmem>>, vector<1x2x32xf32>
    %19 = arith.mulf %16, %18 : vector<1x2x32xf32>
    %20 = arith.index_cast %c0_i32_16 : i32 to index
    %c0_19 = arith.constant 0 : index
    %c0_20 = arith.constant 0 : index
    %21 = vector.load %arg7[%20, %c0_19, %c0_20] : memref<8x2x32xf32, #tpu.memory_space<vmem>>, vector<1x2x32xf32>
    tpu.vector_store %arg7[%20, %c0_19, %c0_20], %19 {strides = array<i32>} : memref<8x2x32xf32, #tpu.memory_space<vmem>>, vector<1x2x32xf32>,
    %c1_i32 = arith.constant 1 : i32
    %22 = arith.index_cast %c1_i32 : i32 to index
    %c0_21 = arith.constant 0 : index
    %c0_22 = arith.constant 0 : index
    %23 = vector.load %arg7[%22, %c0_21, %c0_22] : memref<8x2x32xf32, #tpu.memory_space<vmem>>, vector<1x2x32xf32>
    %24 = arith.mulf %19, %23 : vector<1x2x32xf32>
    %25 = arith.index_cast %c1_i32 : i32 to index
    %c0_23 = arith.constant 0 : index
    %c0_24 = arith.constant 0 : index
    %26 = vector.load %arg7[%25, %c0_23, %c0_24] : memref<8x2x32xf32, #tpu.memory_space<vmem>>, vector<1x2x32xf32>
    tpu.vector_store %arg7[%25, %c0_23, %c0_24], %24 {strides = array<i32>} : memref<8x2x32xf32, #tpu.memory_space<vmem>>, vector<1x2x32xf32>,
    %c2_i32 = arith.constant 2 : i32
    %27 = arith.index_cast %c2_i32 : i32 to index
    %c0_25 = arith.constant 0 : index
    %c0_26 = arith.constant 0 : index
    %28 = vector.load %arg7[%27, %c0_25, %c0_26] : memref<8x2x32xf32, #tpu.memory_space<vmem>>, vector<1x2x32xf32>
    %29 = arith.mulf %24, %28 : vector<1x2x32xf32>
    %30 = arith.index_cast %c2_i32 : i32 to index
    %c0_27 = arith.constant 0 : index
    %c0_28 = arith.constant 0 : index
    %31 = vector.load %arg7[%30, %c0_27, %c0_28] : memref<8x2x32xf32, #tpu.memory_space<vmem>>, vector<1x2x32xf32>
    tpu.vector_store %arg7[%30, %c0_27, %c0_28], %29 {strides = array<i32>} : memref<8x2x32xf32, #tpu.memory_space<vmem>>, vector<1x2x32xf32>,
    %c3_i32 = arith.constant 3 : i32
    %32 = arith.index_cast %c3_i32 : i32 to index
    %c0_29 = arith.constant 0 : index
    %c0_30 = arith.constant 0 : index
    %33 = vector.load %arg7[%32, %c0_29, %c0_30] : memref<8x2x32xf32, #tpu.memory_space<vmem>>, vector<1x2x32xf32>
    %34 = arith.mulf %29, %33 : vector<1x2x32xf32>
    %35 = arith.index_cast %c3_i32 : i32 to index
    %c0_31 = arith.constant 0 : index
    %c0_32 = arith.constant 0 : index
    %36 = vector.load %arg7[%35, %c0_31, %c0_32] : memref<8x2x32xf32, #tpu.memory_space<vmem>>, vector<1x2x32xf32>
    tpu.vector_store %arg7[%35, %c0_31, %c0_32], %34 {strides = array<i32>} : memref<8x2x32xf32, #tpu.memory_space<vmem>>, vector<1x2x32xf32>,
    %c4_i32 = arith.constant 4 : i32
    %37 = arith.index_cast %c4_i32 : i32 to index
    %c0_33 = arith.constant 0 : index
    %c0_34 = arith.constant 0 : index
    %38 = vector.load %arg7[%37, %c0_33, %c0_34] : memref<8x2x32xf32, #tpu.memory_space<vmem>>, vector<1x2x32xf32>
    %39 = arith.mulf %34, %38 : vector<1x2x32xf32>
    %40 = arith.index_cast %c4_i32 : i32 to index
    %c0_35 = arith.constant 0 : index
    %c0_36 = arith.constant 0 : index
    %41 = vector.load %arg7[%40, %c0_35, %c0_36] : memref<8x2x32xf32, #tpu.memory_space<vmem>>, vector<1x2x32xf32>
    tpu.vector_store %arg7[%40, %c0_35, %c0_36], %39 {strides = array<i32>} : memref<8x2x32xf32, #tpu.memory_space<vmem>>, vector<1x2x32xf32>,
    %c5_i32 = arith.constant 5 : i32
    %42 = arith.index_cast %c5_i32 : i32 to index
    %c0_37 = arith.constant 0 : index
    %c0_38 = arith.constant 0 : index
    %43 = vector.load %arg7[%42, %c0_37, %c0_38] : memref<8x2x32xf32, #tpu.memory_space<vmem>>, vector<1x2x32xf32>
    %44 = arith.mulf %39, %43 : vector<1x2x32xf32>
    %45 = arith.index_cast %c5_i32 : i32 to index
    %c0_39 = arith.constant 0 : index
    %c0_40 = arith.constant 0 : index
    %46 = vector.load %arg7[%45, %c0_39, %c0_40] : memref<8x2x32xf32, #tpu.memory_space<vmem>>, vector<1x2x32xf32>
    tpu.vector_store %arg7[%45, %c0_39, %c0_40], %44 {strides = array<i32>} : memref<8x2x32xf32, #tpu.memory_space<vmem>>, vector<1x2x32xf32>,
    %c6_i32 = arith.constant 6 : i32
    %47 = arith.index_cast %c6_i32 : i32 to index
    %c0_41 = arith.constant 0 : index
    %c0_42 = arith.constant 0 : index
    %48 = vector.load %arg7[%47, %c0_41, %c0_42] : memref<8x2x32xf32, #tpu.memory_space<vmem>>, vector<1x2x32xf32>
    %49 = arith.mulf %44, %48 : vector<1x2x32xf32>
    %50 = arith.index_cast %c6_i32 : i32 to index
    %c0_43 = arith.constant 0 : index
    %c0_44 = arith.constant 0 : index
    %51 = vector.load %arg7[%50, %c0_43, %c0_44] : memref<8x2x32xf32, #tpu.memory_space<vmem>>, vector<1x2x32xf32>
    tpu.vector_store %arg7[%50, %c0_43, %c0_44], %49 {strides = array<i32>} : memref<8x2x32xf32, #tpu.memory_space<vmem>>, vector<1x2x32xf32>,
    %c7_i32 = arith.constant 7 : i32
    %52 = arith.index_cast %c7_i32 : i32 to index
    %c0_45 = arith.constant 0 : index
    %c0_46 = arith.constant 0 : index
    %53 = vector.load %arg7[%52, %c0_45, %c0_46] : memref<8x2x32xf32, #tpu.memory_space<vmem>>, vector<1x2x32xf32>
    %54 = arith.mulf %49, %53 : vector<1x2x32xf32>
    %55 = arith.index_cast %c7_i32 : i32 to index
    %c0_47 = arith.constant 0 : index
    %c0_48 = arith.constant 0 : index
    %56 = vector.load %arg7[%55, %c0_47, %c0_48] : memref<8x2x32xf32, #tpu.memory_space<vmem>>, vector<1x2x32xf32>
    tpu.vector_store %arg7[%55, %c0_47, %c0_48], %54 {strides = array<i32>} : memref<8x2x32xf32, #tpu.memory_space<vmem>>, vector<1x2x32xf32>,
    %c8_i32 = arith.constant 8 : i32
    %c0_49 = arith.constant 0 : index
    %c0_50 = arith.constant 0 : index
    %c0_51 = arith.constant 0 : index
    %57 = vector.load %arg9[%c0_49, %c0_50, %c0_51] : memref<1x2x32xf32, #tpu.memory_space<vmem>>, vector<1x2x32xf32>
    tpu.vector_store %arg9[%c0_49, %c0_50, %c0_51], %54 {strides = array<i32>} : memref<1x2x32xf32, #tpu.memory_space<vmem>>, vector<1x2x32xf32>,
    %c0_52 = arith.constant 0 : index
    %c0_53 = arith.constant 0 : index
    %c0_54 = arith.constant 0 : index
    %58 = vector.load %arg8[%c0_52, %c0_53, %c0_54] : memref<8x2x32xf32, #tpu.memory_space<vmem>>, vector<8x2x32xf32>
    %c0_55 = arith.constant 0 : index
    %c0_56 = arith.constant 0 : index
    %c0_57 = arith.constant 0 : index
    %59 = vector.load %arg7[%c0_55, %c0_56, %c0_57] : memref<8x2x32xf32, #tpu.memory_space<vmem>>, vector<8x2x32xf32>
    %cst_58 = arith.constant 9.99999974E-5 : f32
    %60 = vector.broadcast %cst_58 : f32 to vector<8x2x32xf32>
    %61 = arith.addf %59, %60 : vector<8x2x32xf32>
    %62 = arith.divf %58, %61 : vector<8x2x32xf32>
    %c0_59 = arith.constant 0 : index
    %c0_60 = arith.constant 0 : index
    %c0_61 = arith.constant 0 : index
    %63 = vector.load %arg8[%c0_59, %c0_60, %c0_61] : memref<8x2x32xf32, #tpu.memory_space<vmem>>, vector<8x2x32xf32>
    tpu.vector_store %arg8[%c0_59, %c0_60, %c0_61], %62 {strides = array<i32>} : memref<8x2x32xf32, #tpu.memory_space<vmem>>, vector<8x2x32xf32>,
    %c0_62 = arith.constant 0 : index
    %c0_63 = arith.constant 0 : index
    %c0_64 = arith.constant 0 : index
    %64 = vector.load %arg10[%c0_62, %c0_63, %c0_64] : memref<1x2x32xf32, #tpu.memory_space<vmem>>, vector<1x2x32xf32>
    %c0_i32_65 = arith.constant 0 : i32
    %65 = arith.index_cast %c0_i32_65 : i32 to index
    %c0_66 = arith.constant 0 : index
    %c0_67 = arith.constant 0 : index
    %66 = vector.load %arg8[%65, %c0_66, %c0_67] : memref<8x2x32xf32, #tpu.memory_space<vmem>>, vector<1x2x32xf32>
    %67 = arith.addf %64, %66 : vector<1x2x32xf32>
    %68 = arith.index_cast %c0_i32_65 : i32 to index
    %c0_68 = arith.constant 0 : index
    %c0_69 = arith.constant 0 : index
    %69 = vector.load %arg8[%68, %c0_68, %c0_69] : memref<8x2x32xf32, #tpu.memory_space<vmem>>, vector<1x2x32xf32>
    tpu.vector_store %arg8[%68, %c0_68, %c0_69], %67 {strides = array<i32>} : memref<8x2x32xf32, #tpu.memory_space<vmem>>, vector<1x2x32xf32>,
    %c1_i32_70 = arith.constant 1 : i32
    %70 = arith.index_cast %c1_i32_70 : i32 to index
    %c0_71 = arith.constant 0 : index
    %c0_72 = arith.constant 0 : index
    %71 = vector.load %arg8[%70, %c0_71, %c0_72] : memref<8x2x32xf32, #tpu.memory_space<vmem>>, vector<1x2x32xf32>
    %72 = arith.addf %67, %71 : vector<1x2x32xf32>
    %73 = arith.index_cast %c1_i32_70 : i32 to index
    %c0_73 = arith.constant 0 : index
    %c0_74 = arith.constant 0 : index
    %74 = vector.load %arg8[%73, %c0_73, %c0_74] : memref<8x2x32xf32, #tpu.memory_space<vmem>>, vector<1x2x32xf32>
    tpu.vector_store %arg8[%73, %c0_73, %c0_74], %72 {strides = array<i32>} : memref<8x2x32xf32, #tpu.memory_space<vmem>>, vector<1x2x32xf32>,
    %c2_i32_75 = arith.constant 2 : i32
    %75 = arith.index_cast %c2_i32_75 : i32 to index
    %c0_76 = arith.constant 0 : index
    %c0_77 = arith.constant 0 : index
    %76 = vector.load %arg8[%75, %c0_76, %c0_77] : memref<8x2x32xf32, #tpu.memory_space<vmem>>, vector<1x2x32xf32>
    %77 = arith.addf %72, %76 : vector<1x2x32xf32>
    %78 = arith.index_cast %c2_i32_75 : i32 to index
    %c0_78 = arith.constant 0 : index
    %c0_79 = arith.constant 0 : index
    %79 = vector.load %arg8[%78, %c0_78, %c0_79] : memref<8x2x32xf32, #tpu.memory_space<vmem>>, vector<1x2x32xf32>
    tpu.vector_store %arg8[%78, %c0_78, %c0_79], %77 {strides = array<i32>} : memref<8x2x32xf32, #tpu.memory_space<vmem>>, vector<1x2x32xf32>,
    %c3_i32_80 = arith.constant 3 : i32
    %80 = arith.index_cast %c3_i32_80 : i32 to index
    %c0_81 = arith.constant 0 : index
    %c0_82 = arith.constant 0 : index
    %81 = vector.load %arg8[%80, %c0_81, %c0_82] : memref<8x2x32xf32, #tpu.memory_space<vmem>>, vector<1x2x32xf32>
    %82 = arith.addf %77, %81 : vector<1x2x32xf32>
    %83 = arith.index_cast %c3_i32_80 : i32 to index
    %c0_83 = arith.constant 0 : index
    %c0_84 = arith.constant 0 : index
    %84 = vector.load %arg8[%83, %c0_83, %c0_84] : memref<8x2x32xf32, #tpu.memory_space<vmem>>, vector<1x2x32xf32>
    tpu.vector_store %arg8[%83, %c0_83, %c0_84], %82 {strides = array<i32>} : memref<8x2x32xf32, #tpu.memory_space<vmem>>, vector<1x2x32xf32>,
    %c4_i32_85 = arith.constant 4 : i32
    %85 = arith.index_cast %c4_i32_85 : i32 to index
    %c0_86 = arith.constant 0 : index
    %c0_87 = arith.constant 0 : index
    %86 = vector.load %arg8[%85, %c0_86, %c0_87] : memref<8x2x32xf32, #tpu.memory_space<vmem>>, vector<1x2x32xf32>
    %87 = arith.addf %82, %86 : vector<1x2x32xf32>
    %88 = arith.index_cast %c4_i32_85 : i32 to index
    %c0_88 = arith.constant 0 : index
    %c0_89 = arith.constant 0 : index
    %89 = vector.load %arg8[%88, %c0_88, %c0_89] : memref<8x2x32xf32, #tpu.memory_space<vmem>>, vector<1x2x32xf32>
    tpu.vector_store %arg8[%88, %c0_88, %c0_89], %87 {strides = array<i32>} : memref<8x2x32xf32, #tpu.memory_space<vmem>>, vector<1x2x32xf32>,
    %c5_i32_90 = arith.constant 5 : i32
    %90 = arith.index_cast %c5_i32_90 : i32 to index
    %c0_91 = arith.constant 0 : index
    %c0_92 = arith.constant 0 : index
    %91 = vector.load %arg8[%90, %c0_91, %c0_92] : memref<8x2x32xf32, #tpu.memory_space<vmem>>, vector<1x2x32xf32>
    %92 = arith.addf %87, %91 : vector<1x2x32xf32>
    %93 = arith.index_cast %c5_i32_90 : i32 to index
    %c0_93 = arith.constant 0 : index
    %c0_94 = arith.constant 0 : index
    %94 = vector.load %arg8[%93, %c0_93, %c0_94] : memref<8x2x32xf32, #tpu.memory_space<vmem>>, vector<1x2x32xf32>
    tpu.vector_store %arg8[%93, %c0_93, %c0_94], %92 {strides = array<i32>} : memref<8x2x32xf32, #tpu.memory_space<vmem>>, vector<1x2x32xf32>,
    %c6_i32_95 = arith.constant 6 : i32
    %95 = arith.index_cast %c6_i32_95 : i32 to index
    %c0_96 = arith.constant 0 : index
    %c0_97 = arith.constant 0 : index
    %96 = vector.load %arg8[%95, %c0_96, %c0_97] : memref<8x2x32xf32, #tpu.memory_space<vmem>>, vector<1x2x32xf32>
    %97 = arith.addf %92, %96 : vector<1x2x32xf32>
    %98 = arith.index_cast %c6_i32_95 : i32 to index
    %c0_98 = arith.constant 0 : index
    %c0_99 = arith.constant 0 : index
    %99 = vector.load %arg8[%98, %c0_98, %c0_99] : memref<8x2x32xf32, #tpu.memory_space<vmem>>, vector<1x2x32xf32>
    tpu.vector_store %arg8[%98, %c0_98, %c0_99], %97 {strides = array<i32>} : memref<8x2x32xf32, #tpu.memory_space<vmem>>, vector<1x2x32xf32>,
    %c7_i32_100 = arith.constant 7 : i32
    %100 = arith.index_cast %c7_i32_100 : i32 to index
    %c0_101 = arith.constant 0 : index
    %c0_102 = arith.constant 0 : index
    %101 = vector.load %arg8[%100, %c0_101, %c0_102] : memref<8x2x32xf32, #tpu.memory_space<vmem>>, vector<1x2x32xf32>
    %102 = arith.addf %97, %101 : vector<1x2x32xf32>
    %103 = arith.index_cast %c7_i32_100 : i32 to index
    %c0_103 = arith.constant 0 : index
    %c0_104 = arith.constant 0 : index
    %104 = vector.load %arg8[%103, %c0_103, %c0_104] : memref<8x2x32xf32, #tpu.memory_space<vmem>>, vector<1x2x32xf32>
    tpu.vector_store %arg8[%103, %c0_103, %c0_104], %102 {strides = array<i32>} : memref<8x2x32xf32, #tpu.memory_space<vmem>>, vector<1x2x32xf32>,
    %c8_i32_105 = arith.constant 8 : i32
    %c0_106 = arith.constant 0 : index
    %c0_107 = arith.constant 0 : index
    %c0_108 = arith.constant 0 : index
    %105 = vector.load %arg10[%c0_106, %c0_107, %c0_108] : memref<1x2x32xf32, #tpu.memory_space<vmem>>, vector<1x2x32xf32>
    tpu.vector_store %arg10[%c0_106, %c0_107, %c0_108], %102 {strides = array<i32>} : memref<1x2x32xf32, #tpu.memory_space<vmem>>, vector<1x2x32xf32>,
    %c0_109 = arith.constant 0 : index
    %c0_110 = arith.constant 0 : index
    %c0_111 = arith.constant 0 : index
    %106 = vector.load %arg5[%c0_109, %c0_110, %c0_111] : memref<8x2x32xf32, #tpu.memory_space<vmem>>, vector<8x2x32xf32>
    %107 = arith.negf %106 : vector<8x2x32xf32>
    %108 = math.exp %107 : vector<8x2x32xf32>
    %cst_112 = arith.constant 1.000000e+00 : f32
    %109 = vector.broadcast %cst_112 : f32 to vector<8x2x32xf32>
    %110 = arith.addf %109, %108 : vector<8x2x32xf32>
    %111 = arith.divf %109, %110 : vector<8x2x32xf32>
    %c0_113 = arith.constant 0 : index
    %c0_114 = arith.constant 0 : index
    %c0_115 = arith.constant 0 : index
    %112 = vector.load %arg7[%c0_113, %c0_114, %c0_115] : memref<8x2x32xf32, #tpu.memory_space<vmem>>, vector<8x2x32xf32>
    %c0_116 = arith.constant 0 : index
    %c0_117 = arith.constant 0 : index
    %c0_118 = arith.constant 0 : index
    %113 = vector.load %arg8[%c0_116, %c0_117, %c0_118] : memref<8x2x32xf32, #tpu.memory_space<vmem>>, vector<8x2x32xf32>
    %114 = arith.mulf %112, %113 : vector<8x2x32xf32>
    %115 = math.tanh %114 : vector<8x2x32xf32>
    %116 = arith.mulf %115, %111 : vector<8x2x32xf32>
    %c0_119 = arith.constant 0 : index
    %c0_120 = arith.constant 0 : index
    %c0_121 = arith.constant 0 : index
    %117 = vector.load %arg6[%c0_119, %c0_120, %c0_121] : memref<8x2x32xf32, #tpu.memory_space<vmem>>, vector<8x2x32xf32>
    tpu.vector_store %arg6[%c0_119, %c0_120, %c0_121], %116 {strides = array<i32>} : memref<8x2x32xf32, #tpu.memory_space<vmem>>, vector<8x2x32xf32>,
    return
  }
  func.func @transform_0(%arg0: i32, %arg1: i32, %arg2: i32) -> (i32, i32, i32) {
    %c0_i32 = arith.constant 0 : i32
    return %arg2, %arg0, %arg1 : i32, i32, i32
  }
  func.func @transform_1(%arg0: i32, %arg1: i32, %arg2: i32) -> (i32, i32, i32) {
    %c0_i32 = arith.constant 0 : i32
    return %arg2, %arg0, %arg1 : i32, i32, i32
  }
  func.func @transform_2(%arg0: i32, %arg1: i32, %arg2: i32) -> (i32, i32, i32) {
    %c0_i32 = arith.constant 0 : i32
    return %arg2, %arg0, %arg1 : i32, i32, i32
  }
  func.func @transform_3(%arg0: i32, %arg1: i32, %arg2: i32) -> (i32, i32, i32) {
    %c0_i32 = arith.constant 0 : i32
    return %arg2, %arg0, %arg1 : i32, i32, i32
  }
}

</mosaic_0001>

<llo_original>
// kernel: tpu_custom_call.1
$region0: #{tpu_custom_call.1}
  #allocation0 [shape = 'u32[]', space=smem, size = 0x4, offset = 0x4, fixed_abs, tag = 'smem constant byte address 0x4 - core index']
  #allocation1 [shape = 'u32[144,128]{1,0:T(1,128)}', space=vmem, size = 0x12000, scoped, tag = 'internal scratch']
  #allocation2 [shape = 'f32[8,2,32]{2,1,0:T(2,128)}', space=vmem, size = 0x2000, scoped, tag = 'scratch operand']
  #allocation3 [shape = 'f32[8,2,32]{2,1,0:T(2,128)}', space=vmem, size = 0x2000, scoped, tag = 'scratch operand']
  #allocation4 [shape = 'f32[1,2,32]{2,1,0:T(2,128)}', space=vmem, size = 0x400, scoped, tag = 'scratch operand']
  #allocation5 [shape = 'f32[1,2,32]{2,1,0:T(2,128)}', space=vmem, size = 0x400, scoped, tag = 'scratch operand']
  %s0 = inlined_call_operand.hbm [shape: f32[8,2,32], index: 0, kind: input, shape index: {}]
  %s1 = inlined_call_operand.hbm [shape: f32[8,2,32], index: 1, kind: input, shape index: {}]
  %s2 = inlined_call_operand.hbm [shape: f32[8,2,32], index: 2, kind: input, shape index: {}]
  %s3 = inlined_call_operand.hbm [shape: f32[8,2,32], index: 3, kind: output, shape index: {}]
  %s4 = sld [smem:[#allocation0]]
  $region38: #{tpu_custom_call.1} parent=0
    _
  %s6 = ssub.s32 1, %s4
  %s7 = scalar_select 0, %s6, %s4
  $region1: #{tpu_custom_call.1} parent=0
    #allocation6 [shape = 'u8[8192]{0}', space=vmem, size = 0x2000, scoped, tag = 'input window, operand 0, single buffered']
    #allocation7 [shape = 's32[1]{0}', space=sflag, size = 0x4, scoped, tag = 'scoped memory for tpu_custom_call.1']
    #allocation8 [shape = 's32[1]{0}', space=sflag, size = 0x4, scoped, tag = 'scoped memory for tpu_custom_call.1']
    #allocation9 [shape = 'u8[8192]{0}', space=vmem, size = 0x2000, scoped, tag = 'input window, operand 1, single buffered']
    #allocation10 [shape = 's32[1]{0}', space=sflag, size = 0x4, scoped, tag = 'scoped memory for tpu_custom_call.1']
    #allocation11 [shape = 'u8[8192]{0}', space=vmem, size = 0x2000, scoped, tag = 'input window, operand 2, single buffered']
    #allocation12 [shape = 'u8[8192]{0}', space=vmem, size = 0x2000, scoped, tag = 'output window, operand 0, single buffered']
    %8 = vsyncpa [#allocation7], 0
    %9 = vsyncpa [#allocation10], 0
    %10 = vsyncpa [#allocation8], 0
    // Predicated region
    $region2: #{tpu_custom_call.1} parent=1 // pred_check
      _
    $region3: #{tpu_custom_call.1} parent=1 // pred_check_branch
      %12 = sbr.rel (0) target = $region5
    $region4: #{tpu_custom_call.1} parent=1 // pred_region
      %s14 = ssub.s32 256, 256
      %15 = vsyncadd [#allocation7], %s14
      %s16 = sshll.u32 [#allocation6], 4
      %s17 = int_to_ptr.vmem [resolvable:$true] %s16
      %22 = dma.hbm_to_vmem [thread:$0]  %s0, 256, %s17, [#allocation7], 32, 32, 2
    $region5: #{tpu_custom_call.1} parent=1 // pred_fallthru
      _
    // Predicated region
    $region6: #{tpu_custom_call.1} parent=1 // pred_check
      _
    $region7: #{tpu_custom_call.1} parent=1 // pred_check_branch
      %24 = sbr.rel (0) target = $region9
    $region8: #{tpu_custom_call.1} parent=1 // pred_region
      %s26 = ssub.s32 256, 256
      %27 = vsyncadd [#allocation10], %s26
      %s28 = sshll.u32 [#allocation9], 4
      %s29 = int_to_ptr.vmem [resolvable:$true] %s28
      %34 = dma.hbm_to_vmem [thread:$0]  %s1, 256, %s29, [#allocation10], 32, 32, 2
    $region9: #{tpu_custom_call.1} parent=1 // pred_fallthru
      _
    // Predicated region
    $region10: #{tpu_custom_call.1} parent=1 // pred_check
      _
    $region11: #{tpu_custom_call.1} parent=1 // pred_check_branch
      %36 = sbr.rel (0) target = $region13
    $region12: #{tpu_custom_call.1} parent=1 // pred_region
      %s38 = ssub.s32 256, 256
      %39 = vsyncadd [#allocation10], %s38
      %s40 = sshll.u32 [#allocation11], 4
      %s41 = int_to_ptr.vmem [resolvable:$true] %s40
      %46 = dma.hbm_to_vmem [thread:$0]  %s2, 256, %s41, [#allocation10], 32, 32, 2
    $region13: #{tpu_custom_call.1} parent=1 // pred_fallthru
      _
    // Predicated region
    $region14: #{tpu_custom_call.1} parent=1 // pred_check
      _
    $region15: #{tpu_custom_call.1} parent=1 // pred_check_branch
      %48 = sbr.rel (0) target = $region17
    $region16: #{tpu_custom_call.1} parent=1 // pred_region
      %49 = dma.done [#allocation7], 256
    $region17: #{tpu_custom_call.1} parent=1 // pred_fallthru
      _
    // Predicated region
    $region18: #{tpu_custom_call.1} parent=1 // pred_check
      _
    $region19: #{tpu_custom_call.1} parent=1 // pred_check_branch
      %51 = sbr.rel (0) target = $region21
    $region20: #{tpu_custom_call.1} parent=1 // pred_region
      %52 = dma.done [#allocation10], 256
    $region21: #{tpu_custom_call.1} parent=1 // pred_fallthru
      _
    // Predicated region
    $region22: #{tpu_custom_call.1} parent=1 // pred_check
      _
    $region23: #{tpu_custom_call.1} parent=1 // pred_check_branch
      %54 = sbr.rel (0) target = $region25
    $region24: #{tpu_custom_call.1} parent=1 // pred_region
      %55 = dma.done [#allocation10], 256
    $region25: #{tpu_custom_call.1} parent=1 // pred_fallthru
      _
    %p56 = scmp.eq.s32.totalorder 0, 0
    // Predicated region
    $region26: #{tpu_custom_call.1} parent=1 // pred_check
      %p57 = pneg %p56
    $region27: #{tpu_custom_call.1} parent=1 // pred_check_branch
      %59 = sbr.rel (%p57) target = $region29
    $region28: #{tpu_custom_call.1} parent=1 // pred_region
      %vm60 = vcmask 254976
      %61 = vst.msk [vmem:[#allocation4] sm:$0x3] %vm60, 1.0
      %62 = vst.msk [vmem:[#allocation5] sm:$0x3] %vm60, 0.0
    $region29: #{tpu_custom_call.1} parent=1 // pred_fallthru
      _
    %v63 = vld [vmem:[#allocation9] sm:$0x3]
    %v64 = vld [vmem:[#allocation9 + $0x2] sm:$0x3]
    %v65 = vld [vmem:[#allocation9 + $0x4] sm:$0x3]
    %v66 = vld [vmem:[#allocation9 + $0x6] sm:$0x3]
    %v67 = vld [vmem:[#allocation9 + $0x8] sm:$0x3]
    %v68 = vld [vmem:[#allocation9 + $0xa] sm:$0x3]
    %v69 = vld [vmem:[#allocation9 + $0xc] sm:$0x3]
    %v70 = vld [vmem:[#allocation9 + $0xe] sm:$0x3]
    %v71 = vxor.u32 %v63, 2147483648
    %v72 = vxor.u32 %v64, 2147483648
    %v73 = vxor.u32 %v65, 2147483648
    %v74 = vxor.u32 %v66, 2147483648
    %v75 = vxor.u32 %v67, 2147483648
    %v76 = vxor.u32 %v68, 2147483648
    %v77 = vxor.u32 %v69, 2147483648
    %v78 = vxor.u32 %v70, 2147483648
    %v79 = vmul.f32 %v71, 1.442695
    %v80 = vpow.pop %v79
    %v81 = vmul.f32 %v72, 1.442695
    %v82 = vpow.pop %v81
    %v83 = vmul.f32 %v73, 1.442695
    %v84 = vpow.pop %v83
    %v85 = vmul.f32 %v74, 1.442695
    %v86 = vpow.pop %v85
    %v87 = vmul.f32 %v75, 1.442695
    %v88 = vpow.pop %v87
    %v89 = vmul.f32 %v76, 1.442695
    %v90 = vpow.pop %v89
    %v91 = vmul.f32 %v77, 1.442695
    %v92 = vpow.pop %v91
    %v93 = vmul.f32 %v78, 1.442695
    %v94 = vpow.pop %v93
    %v95 = vadd.f32 %v80, 1.0
    %v96 = vadd.f32 %v82, 1.0
    %v97 = vadd.f32 %v84, 1.0
    %v98 = vadd.f32 %v86, 1.0
    %v99 = vadd.f32 %v88, 1.0
    %v100 = vadd.f32 %v90, 1.0
    %v101 = vadd.f32 %v92, 1.0
    %v102 = vadd.f32 %v94, 1.0
    %v103 = vrcp.pop %v95
    %v104 = vmul.f32 1.0, %v103
    %v105 = vrcp.pop %v96
    %v106 = vmul.f32 1.0, %v105
    %v107 = vrcp.pop %v97
    %v108 = vmul.f32 1.0, %v107
    %v109 = vrcp.pop %v98
    %v110 = vmul.f32 1.0, %v109
    %v111 = vrcp.pop %v99
    %v112 = vmul.f32 1.0, %v111
    %v113 = vrcp.pop %v100
    %v114 = vmul.f32 1.0, %v113
    %v115 = vrcp.pop %v101
    %v116 = vmul.f32 1.0, %v115
    %v117 = vrcp.pop %v102
    %v118 = vmul.f32 1.0, %v117
    %v119 = vsub.f32 1.0, %v104
    %v120 = vsub.f32 1.0, %v106
    %v121 = vsub.f32 1.0, %v108
    %v122 = vsub.f32 1.0, %v110
    %v123 = vsub.f32 1.0, %v112
    %v124 = vsub.f32 1.0, %v114
    %v125 = vsub.f32 1.0, %v116
    %v126 = vsub.f32 1.0, %v118
    %vm127 = vcmask 254976
    %128 = vst.msk [vmem:[#allocation2] sm:$0x3] %vm127, %v119
    %129 = vst.msk [vmem:[#allocation2 + $0x2] sm:$0x3] %vm127, %v120
    %130 = vst.msk [vmem:[#allocation2 + $0x4] sm:$0x3] %vm127, %v121
    %131 = vst.msk [vmem:[#allocation2 + $0x6] sm:$0x3] %vm127, %v122
    %132 = vst.msk [vmem:[#allocation2 + $0x8] sm:$0x3] %vm127, %v123
    %133 = vst.msk [vmem:[#allocation2 + $0xa] sm:$0x3] %vm127, %v124
    %134 = vst.msk [vmem:[#allocation2 + $0xc] sm:$0x3] %vm127, %v125
    %135 = vst.msk [vmem:[#allocation2 + $0xe] sm:$0x3] %vm127, %v126
    %v136 = vld [vmem:[#allocation6] sm:$0x3]
    %v137 = vld [vmem:[#allocation6 + $0x2] sm:$0x3]
    %v138 = vld [vmem:[#allocation6 + $0x4] sm:$0x3]
    %v139 = vld [vmem:[#allocation6 + $0x6] sm:$0x3]
    %v140 = vld [vmem:[#allocation6 + $0x8] sm:$0x3]
    %v141 = vld [vmem:[#allocation6 + $0xa] sm:$0x3]
    %v142 = vld [vmem:[#allocation6 + $0xc] sm:$0x3]
    %v143 = vld [vmem:[#allocation6 + $0xe] sm:$0x3]
    %v144 = vtanh.pop %v136
    %v145 = vtanh.pop %v137
    %v146 = vtanh.pop %v138
    %v147 = vtanh.pop %v139
    %v148 = vtanh.pop %v140
    %v149 = vtanh.pop %v141
    %v150 = vtanh.pop %v142
    %v151 = vtanh.pop %v143
    %v152 = vmul.f32 %v144, %v104
    %v153 = vmul.f32 %v145, %v106
    %v154 = vmul.f32 %v146, %v108
    %v155 = vmul.f32 %v147, %v110
    %v156 = vmul.f32 %v148, %v112
    %v157 = vmul.f32 %v149, %v114
    %v158 = vmul.f32 %v150, %v116
    %v159 = vmul.f32 %v151, %v118
    %160 = vst.msk [vmem:[#allocation3] sm:$0x3] %vm127, %v152
    %161 = vst.msk [vmem:[#allocation3 + $0x2] sm:$0x3] %vm127, %v153
    %162 = vst.msk [vmem:[#allocation3 + $0x4] sm:$0x3] %vm127, %v154
    %163 = vst.msk [vmem:[#allocation3 + $0x6] sm:$0x3] %vm127, %v155
    %164 = vst.msk [vmem:[#allocation3 + $0x8] sm:$0x3] %vm127, %v156
    %165 = vst.msk [vmem:[#allocation3 + $0xa] sm:$0x3] %vm127, %v157
    %166 = vst.msk [vmem:[#allocation3 + $0xc] sm:$0x3] %vm127, %v158
    %167 = vst.msk [vmem:[#allocation3 + $0xe] sm:$0x3] %vm127, %v159
    %v168 = vld [vmem:[#allocation4] sm:$0x3]
    %v169 = vld [vmem:[#allocation2] sm:$0x3]
    %v170 = vmul.f32 %v168, %v169
    %171 = vst.msk [vmem:[#allocation2] sm:$0x3] %vm127, %v170
    %s172 = scalar_lea.vmem [#allocation2], 2
    %v173 = vld [vmem:[%s172] sm:$0x3]
    %v174 = vmul.f32 %v170, %v173
    %175 = vst.msk [vmem:[%s172] sm:$0x3] %vm127, %v174
    %s176 = scalar_lea.vmem [#allocation2], 4
    %v177 = vld [vmem:[%s176] sm:$0x3]
    %v178 = vmul.f32 %v174, %v177
    %179 = vst.msk [vmem:[%s176] sm:$0x3] %vm127, %v178
    %s180 = scalar_lea.vmem [#allocation2], 6
    %v181 = vld [vmem:[%s180] sm:$0x3]
    %v182 = vmul.f32 %v178, %v181
    %183 = vst.msk [vmem:[%s180] sm:$0x3] %vm127, %v182
    %s184 = scalar_lea.vmem [#allocation2], 8
    %v185 = vld [vmem:[%s184] sm:$0x3]
    %v186 = vmul.f32 %v182, %v185
    %187 = vst.msk [vmem:[%s184] sm:$0x3] %vm127, %v186
    %s188 = scalar_lea.vmem [#allocation2], 10
    %v189 = vld [vmem:[%s188] sm:$0x3]
    %v190 = vmul.f32 %v186, %v189
    %191 = vst.msk [vmem:[%s188] sm:$0x3] %vm127, %v190
    %s192 = scalar_lea.vmem [#allocation2], 12
    %v193 = vld [vmem:[%s192] sm:$0x3]
    %v194 = vmul.f32 %v190, %v193
    %195 = vst.msk [vmem:[%s192] sm:$0x3] %vm127, %v194
    %s196 = scalar_lea.vmem [#allocation2], 14
    %v197 = vld [vmem:[%s196] sm:$0x3]
    %v198 = vmul.f32 %v194, %v197
    %199 = vst.msk [vmem:[%s196] sm:$0x3] %vm127, %v198
    %200 = vst.msk [vmem:[#allocation4] sm:$0x3] %vm127, %v198
    %v201 = vld [vmem:[#allocation3] sm:$0x3]
    %v202 = vld [vmem:[#allocation3 + $0x2] sm:$0x3]
    %v203 = vld [vmem:[#allocation3 + $0x4] sm:$0x3]
    %v204 = vld [vmem:[#allocation3 + $0x6] sm:$0x3]
    %v205 = vld [vmem:[#allocation3 + $0x8] sm:$0x3]
    %v206 = vld [vmem:[#allocation3 + $0xa] sm:$0x3]
    %v207 = vld [vmem:[#allocation3 + $0xc] sm:$0x3]
    %v208 = vld [vmem:[#allocation3 + $0xe] sm:$0x3]
    %v209 = vld [vmem:[#allocation2] sm:$0x3]
    %v210 = vld [vmem:[#allocation2 + $0x2] sm:$0x3]
    %v211 = vld [vmem:[#allocation2 + $0x4] sm:$0x3]
    %v212 = vld [vmem:[#allocation2 + $0x6] sm:$0x3]
    %v213 = vld [vmem:[#allocation2 + $0x8] sm:$0x3]
    %v214 = vld [vmem:[#allocation2 + $0xa] sm:$0x3]
    %v215 = vld [vmem:[#allocation2 + $0xc] sm:$0x3]
    %v216 = vld [vmem:[#allocation2 + $0xe] sm:$0x3]
    %v217 = vadd.f32 %v209, 0.0001
    %v218 = vadd.f32 %v210, 0.0001
    %v219 = vadd.f32 %v211, 0.0001
    %v220 = vadd.f32 %v212, 0.0001
    %v221 = vadd.f32 %v213, 0.0001
    %v222 = vadd.f32 %v214, 0.0001
    %v223 = vadd.f32 %v215, 0.0001
    %v224 = vadd.f32 %v216, 0.0001
    %v225 = vrcp.pop %v217
    %v226 = vmul.f32 %v201, %v225
    %v227 = vrcp.pop %v218
    %v228 = vmul.f32 %v202, %v227
    %v229 = vrcp.pop %v219
    %v230 = vmul.f32 %v203, %v229
    %v231 = vrcp.pop %v220
    %v232 = vmul.f32 %v204, %v231
    %v233 = vrcp.pop %v221
    %v234 = vmul.f32 %v205, %v233
    %v235 = vrcp.pop %v222
    %v236 = vmul.f32 %v206, %v235
    %v237 = vrcp.pop %v223
    %v238 = vmul.f32 %v207, %v237
    %v239 = vrcp.pop %v224
    %v240 = vmul.f32 %v208, %v239
    %241 = vst.msk [vmem:[#allocation3] sm:$0x3] %vm127, %v226
    %242 = vst.msk [vmem:[#allocation3 + $0x2] sm:$0x3] %vm127, %v228
    %243 = vst.msk [vmem:[#allocation3 + $0x4] sm:$0x3] %vm127, %v230
    %244 = vst.msk [vmem:[#allocation3 + $0x6] sm:$0x3] %vm127, %v232
    %245 = vst.msk [vmem:[#allocation3 + $0x8] sm:$0x3] %vm127, %v234
    %246 = vst.msk [vmem:[#allocation3 + $0xa] sm:$0x3] %vm127, %v236
    %247 = vst.msk [vmem:[#allocation3 + $0xc] sm:$0x3] %vm127, %v238
    %248 = vst.msk [vmem:[#allocation3 + $0xe] sm:$0x3] %vm127, %v240
    %v249 = vld [vmem:[#allocation5] sm:$0x3]
    %v250 = vld [vmem:[#allocation3] sm:$0x3]
    %v251 = vadd.f32 %v249, %v250
    %252 = vst.msk [vmem:[#allocation3] sm:$0x3] %vm127, %v251
    %s253 = scalar_lea.vmem [#allocation3], 2
    %v254 = vld [vmem:[%s253] sm:$0x3]
    %v255 = vadd.f32 %v251, %v254
    %256 = vst.msk [vmem:[%s253] sm:$0x3] %vm127, %v255
    %s257 = scalar_lea.vmem [#allocation3], 4
    %v258 = vld [vmem:[%s257] sm:$0x3]
    %v259 = vadd.f32 %v255, %v258
    %260 = vst.msk [vmem:[%s257] sm:$0x3] %vm127, %v259
    %s261 = scalar_lea.vmem [#allocation3], 6
    %v262 = vld [vmem:[%s261] sm:$0x3]
    %v263 = vadd.f32 %v259, %v262
    %264 = vst.msk [vmem:[%s261] sm:$0x3] %vm127, %v263
    %s265 = scalar_lea.vmem [#allocation3], 8
    %v266 = vld [vmem:[%s265] sm:$0x3]
    %v267 = vadd.f32 %v263, %v266
    %268 = vst.msk [vmem:[%s265] sm:$0x3] %vm127, %v267
    %s269 = scalar_lea.vmem [#allocation3], 10
    %v270 = vld [vmem:[%s269] sm:$0x3]
    %v271 = vadd.f32 %v267, %v270
    %272 = vst.msk [vmem:[%s269] sm:$0x3] %vm127, %v271
    %s273 = scalar_lea.vmem [#allocation3], 12
    %v274 = vld [vmem:[%s273] sm:$0x3]
    %v275 = vadd.f32 %v271, %v274
    %276 = vst.msk [vmem:[%s273] sm:$0x3] %vm127, %v275
    %s277 = scalar_lea.vmem [#allocation3], 14
    %v278 = vld [vmem:[%s277] sm:$0x3]
    %v279 = vadd.f32 %v275, %v278
    %280 = vst.msk [vmem:[%s277] sm:$0x3] %vm127, %v279
    %281 = vst.msk [vmem:[#allocation5] sm:$0x3] %vm127, %v279
    %v282 = vld [vmem:[#allocation11] sm:$0x3]
    %v283 = vld [vmem:[#allocation11 + $0x2] sm:$0x3]
    %v284 = vld [vmem:[#allocation11 + $0x4] sm:$0x3]
    %v285 = vld [vmem:[#allocation11 + $0x6] sm:$0x3]
    %v286 = vld [vmem:[#allocation11 + $0x8] sm:$0x3]
    %v287 = vld [vmem:[#allocation11 + $0xa] sm:$0x3]
    %v288 = vld [vmem:[#allocation11 + $0xc] sm:$0x3]
    %v289 = vld [vmem:[#allocation11 + $0xe] sm:$0x3]
    %v290 = vxor.u32 %v282, 2147483648
    %v291 = vxor.u32 %v283, 2147483648
    %v292 = vxor.u32 %v284, 2147483648
    %v293 = vxor.u32 %v285, 2147483648
    %v294 = vxor.u32 %v286, 2147483648
    %v295 = vxor.u32 %v287, 2147483648
    %v296 = vxor.u32 %v288, 2147483648
    %v297 = vxor.u32 %v289, 2147483648
    %v298 = vmul.f32 %v290, 1.442695
    %v299 = vpow.pop %v298
    %v300 = vmul.f32 %v291, 1.442695
    %v301 = vpow.pop %v300
    %v302 = vmul.f32 %v292, 1.442695
    %v303 = vpow.pop %v302
    %v304 = vmul.f32 %v293, 1.442695
    %v305 = vpow.pop %v304
    %v306 = vmul.f32 %v294, 1.442695
    %v307 = vpow.pop %v306
    %v308 = vmul.f32 %v295, 1.442695
    %v309 = vpow.pop %v308
    %v310 = vmul.f32 %v296, 1.442695
    %v311 = vpow.pop %v310
    %v312 = vmul.f32 %v297, 1.442695
    %v313 = vpow.pop %v312
    %v314 = vadd.f32 %v299, 1.0
    %v315 = vadd.f32 %v301, 1.0
    %v316 = vadd.f32 %v303, 1.0
    %v317 = vadd.f32 %v305, 1.0
    %v318 = vadd.f32 %v307, 1.0
    %v319 = vadd.f32 %v309, 1.0
    %v320 = vadd.f32 %v311, 1.0
    %v321 = vadd.f32 %v313, 1.0
    %v322 = vrcp.pop %v314
    %v323 = vmul.f32 1.0, %v322
    %v324 = vrcp.pop %v315
    %v325 = vmul.f32 1.0, %v324
    %v326 = vrcp.pop %v316
    %v327 = vmul.f32 1.0, %v326
    %v328 = vrcp.pop %v317
    %v329 = vmul.f32 1.0, %v328
    %v330 = vrcp.pop %v318
    %v331 = vmul.f32 1.0, %v330
    %v332 = vrcp.pop %v319
    %v333 = vmul.f32 1.0, %v332
    %v334 = vrcp.pop %v320
    %v335 = vmul.f32 1.0, %v334
    %v336 = vrcp.pop %v321
    %v337 = vmul.f32 1.0, %v336
    %v338 = vld [vmem:[#allocation2] sm:$0x3]
    %v339 = vld [vmem:[#allocation2 + $0x2] sm:$0x3]
    %v340 = vld [vmem:[#allocation2 + $0x4] sm:$0x3]
    %v341 = vld [vmem:[#allocation2 + $0x6] sm:$0x3]
    %v342 = vld [vmem:[#allocation2 + $0x8] sm:$0x3]
    %v343 = vld [vmem:[#allocation2 + $0xa] sm:$0x3]
    %v344 = vld [vmem:[#allocation2 + $0xc] sm:$0x3]
    %v345 = vld [vmem:[#allocation2 + $0xe] sm:$0x3]
    %v346 = vld [vmem:[#allocation3] sm:$0x3]
    %v347 = vld [vmem:[#allocation3 + $0x2] sm:$0x3]
    %v348 = vld [vmem:[#allocation3 + $0x4] sm:$0x3]
    %v349 = vld [vmem:[#allocation3 + $0x6] sm:$0x3]
    %v350 = vld [vmem:[#allocation3 + $0x8] sm:$0x3]
    %v351 = vld [vmem:[#allocation3 + $0xa] sm:$0x3]
    %v352 = vld [vmem:[#allocation3 + $0xc] sm:$0x3]
    %v353 = vld [vmem:[#allocation3 + $0xe] sm:$0x3]
    %v354 = vmul.f32 %v338, %v346
    %v355 = vmul.f32 %v339, %v347
    %v356 = vmul.f32 %v340, %v348
    %v357 = vmul.f32 %v341, %v349
    %v358 = vmul.f32 %v342, %v350
    %v359 = vmul.f32 %v343, %v351
    %v360 = vmul.f32 %v344, %v352
    %v361 = vmul.f32 %v345, %v353
    %v362 = vtanh.pop %v354
    %v363 = vtanh.pop %v355
    %v364 = vtanh.pop %v356
    %v365 = vtanh.pop %v357
    %v366 = vtanh.pop %v358
    %v367 = vtanh.pop %v359
    %v368 = vtanh.pop %v360
    %v369 = vtanh.pop %v361
    %v370 = vmul.f32 %v362, %v323
    %v371 = vmul.f32 %v363, %v325
    %v372 = vmul.f32 %v364, %v327
    %v373 = vmul.f32 %v365, %v329
    %v374 = vmul.f32 %v366, %v331
    %v375 = vmul.f32 %v367, %v333
    %v376 = vmul.f32 %v368, %v335
    %v377 = vmul.f32 %v369, %v337
    %378 = vst.msk [vmem:[#allocation12] sm:$0x3] %vm127, %v370
    %379 = vst.msk [vmem:[#allocation12 + $0x2] sm:$0x3] %vm127, %v371
    %380 = vst.msk [vmem:[#allocation12 + $0x4] sm:$0x3] %vm127, %v372
    %381 = vst.msk [vmem:[#allocation12 + $0x6] sm:$0x3] %vm127, %v373
    %382 = vst.msk [vmem:[#allocation12 + $0x8] sm:$0x3] %vm127, %v374
    %383 = vst.msk [vmem:[#allocation12 + $0xa] sm:$0x3] %vm127, %v375
    %384 = vst.msk [vmem:[#allocation12 + $0xc] sm:$0x3] %vm127, %v376
    %385 = vst.msk [vmem:[#allocation12 + $0xe] sm:$0x3] %vm127, %v377
    // Predicated region
    $region30: #{tpu_custom_call.1} parent=1 // pred_check
      _
    $region31: #{tpu_custom_call.1} parent=1 // pred_check_branch
      %387 = sbr.rel (0) target = $region33
    $region32: #{tpu_custom_call.1} parent=1 // pred_region
      %s389 = ssub.s32 256, 256
      %390 = vsyncadd [#allocation8], %s389
      %s391 = sshll.u32 [#allocation12], 4
      %s392 = int_to_ptr.vmem [resolvable:$true] %s391
      %397 = dma.vmem_to_hbm [thread:$0]  %s392, 256, %s3, [#allocation8], 32, 32, 2
    $region33: #{tpu_custom_call.1} parent=1 // pred_fallthru
      _
    // Predicated region
    $region34: #{tpu_custom_call.1} parent=1 // pred_check
      _
    $region35: #{tpu_custom_call.1} parent=1 // pred_check_branch
      %399 = sbr.rel (0) target = $region37
    $region36: #{tpu_custom_call.1} parent=1 // pred_region
      %400 = dma.done [#allocation8], 256
    $region37: #{tpu_custom_call.1} parent=1 // pred_fallthru
      _
    %401 = vsyncpa [#allocation7], 1
    %402 = vsyncpa [#allocation10], 1
    %403 = vsyncpa [#allocation8], 1

</llo_original>
